<compile_context>
chip_gen: v6e
topology: v6e:2x2x1
jax: 0.10.0
libtpu: 0.0.40
codegen_flags: <defaults>
</compile_context>

<pallas_src>
import math
import functools

import jax
import jax.numpy as jnp
from jax.experimental import pallas as pl
from jax.experimental.pallas import tpu as pltpu


def _round_up(x, m):
    return (x + m - 1) // m * m


def _mlm_head_kernel(x_ref, w1_ref, b1_ref, g_ref, beta_ref, w2_ref, b2_ref,
                     o_ref, h_ref, *, eps):
    # NOTE: grid = (row tiles, vocab tiles).  The vocab axis j MUST stay the
    # innermost (last, "arbitrary") grid axis so that j == 0 runs before all
    # other j for the same row tile and h_ref is valid for reuse.

    # ---- Stage 1: dense -> erf-gelu -> LayerNorm, once per row tile ---------
    @pl.when(pl.program_id(1) == 0)
    def _():
        # Dense (H -> H); bf16 (or f32) operands, f32 accumulation on the MXU.
        h = jnp.dot(x_ref[...], w1_ref[...], preferred_element_type=jnp.float32)
        h = h + b1_ref[...].astype(jnp.float32)

        # gelu: x * 0.5 * (1 + erf(x / sqrt(2)))  (matches the PyTorch gelu)
        h = h * 0.5 * (1.0 + jax.lax.erf(h * (1.0 / math.sqrt(2.0))))

        # LayerNorm over hidden dim (biased variance, single-pass moments).
        inv_h = 1.0 / h.shape[-1]
        mean = jnp.sum(h, axis=-1, keepdims=True) * inv_h
        mean_sq = jnp.sum(h * h, axis=-1, keepdims=True) * inv_h
        var = jnp.maximum(mean_sq - mean * mean, 0.0)   # clamp cancellation
        scale = jax.lax.rsqrt(var + eps)
        h = (h - mean) * scale
        h = h * g_ref[...].astype(jnp.float32) + beta_ref[...].astype(jnp.float32)

        # Cached in matmul dtype (bf16 by default) -> decoder GEMM fast path.
        h_ref[...] = h.astype(h_ref.dtype)

    # ---- Stage 2: decoder (H -> tn vocab tile) + bias, every grid step ------
    logits = jnp.dot(h_ref[...], w2_ref[...], preferred_element_type=jnp.float32)
    logits = logits + b2_ref[...].astype(jnp.float32)
    o_ref[...] = logits.astype(o_ref.dtype)


def bert_only_mlm_head(sequence_output, params, *, eps=1e-12,
                       tm=512, tn=2048, matmul_dtype=jnp.bfloat16,
                       out_dtype=None, vmem_limit_bytes=None):
    """sequence_output: (B, S, H) -> prediction_scores: (B, S, V).

    tm: row tile (multiple of 8).  tn: vocab tile (multiple of 128).
    matmul_dtype: dtype the MXU matmuls run in (f32 accumulation always).
    out_dtype: logits dtype (defaults to the input dtype; bf16 halves writeback).
    """
    B, S, H = sequence_output.shape
    V = params["decoder_w"].shape[1]
    N = B * S
    out_dtype = sequence_output.dtype if out_dtype is None else out_dtype
    matmul_dtype = jnp.dtype(matmul_dtype)

    # f32 tiles are twice as big; shrink defaults so VMEM still fits everywhere.
    if matmul_dtype == jnp.dtype(jnp.float32):
        tm = min(tm, 256)
        tn = min(tn, 1024)

    # Clamp tiles to the (padded) problem size; keep sublane/lane alignment.
    tm = min(tm, _round_up(N, 8))
    tn = min(tn, _round_up(V, 128))
    # Keep >= 2 row tiles when possible so the "parallel" row axis can be
    # sharded across both v7x TensorCores.
    if N > 8 and _round_up(N, tm) // tm < 2:
        tm = _round_up((N + 1) // 2, 8)

    N_pad = _round_up(N, tm)
    V_pad = _round_up(V, tn)

    # Wrapper-side casts (ideally weights are already stored in matmul_dtype,
    # which also halves the dominant decoder-weight HBM stream).
    x2d = sequence_output.reshape(N, H).astype(matmul_dtype)
    if N_pad != N:
        x2d = jnp.pad(x2d, ((0, N_pad - N), (0, 0)))

    w1 = params["dense_w"].astype(matmul_dtype)
    dec_w = params["decoder_w"].astype(matmul_dtype)
    b1 = params["dense_b"].astype(jnp.float32)
    ln_g = params["ln_g"].astype(jnp.float32)
    ln_b = params["ln_b"].astype(jnp.float32)
    dec_b = params["decoder_b"].astype(jnp.float32)
    if V_pad != V:
        dec_w = jnp.pad(dec_w, ((0, 0), (0, V_pad - V)))
        dec_b = jnp.pad(dec_b, ((0, 0), (0, V_pad - V)))

    grid = (N_pad // tm, V_pad // tn)

    msize = matmul_dtype.itemsize
    osize = jnp.dtype(out_dtype).itemsize

    # VMEM budget for the chosen tiles (double-buffered operands + scratch),
    # with headroom; floor at 32 MiB, cap at 64 MiB (v7x physical VMEM).
    vmem_est = (2 * tm * H * msize            # x row tile
                + 2 * H * H * msize           # dense weight
                + 2 * H * tn * msize          # decoder weight tile
                + 2 * tm * tn * osize         # logits tile
                + tm * H * msize              # h scratch
                + 2 * (3 * H + tn) * 4)       # bias / LN vectors (f32)
    if vmem_limit_bytes is None:
        vmem_limit_bytes = min(max(int(vmem_est * 1.5) + (4 << 20), 32 << 20),
                               64 << 20)

    cost = pl.CostEstimate(
        flops=2 * N_pad * H * (H + V_pad),
        transcendentals=N_pad * H,
        bytes_accessed=(N_pad * H * msize                      # activations in
                        + H * H * msize                        # dense weight
                        + grid[0] * H * V_pad * msize          # decoder weight stream
                        + N_pad * V_pad * osize))              # logits out

    kernel = functools.partial(_mlm_head_kernel, eps=eps)

    out2d = pl.pallas_call(
        kernel,
        out_shape=jax.ShapeDtypeStruct((N_pad, V_pad), out_dtype),
        grid_spec=pltpu.PrefetchScalarGridSpec(
            num_scalar_prefetch=0,
            grid=grid,
            in_specs=[
                pl.BlockSpec((tm, H), lambda i, j: (i, 0)),    # x row tile
                pl.BlockSpec((H, H), lambda i, j: (0, 0)),     # dense weight (in, out)
                pl.BlockSpec((1, H), lambda i, j: (0, 0)),     # dense bias
                pl.BlockSpec((1, H), lambda i, j: (0, 0)),     # LN gamma
                pl.BlockSpec((1, H), lambda i, j: (0, 0)),     # LN beta
                pl.BlockSpec((H, tn), lambda i, j: (0, j)),    # decoder weight tile
                pl.BlockSpec((1, tn), lambda i, j: (0, j)),    # decoder bias tile
            ],
            out_specs=pl.BlockSpec((tm, tn), lambda i, j: (i, j)),
            scratch_shapes=[pltpu.VMEM((tm, H), matmul_dtype)],  # cached LN output
        ),
        compiler_params=pltpu.CompilerParams(
            dimension_semantics=("parallel", "arbitrary"),
            vmem_limit_bytes=vmem_limit_bytes),
        cost_estimate=cost,
    )(x2d, w1, b1, ln_g, ln_b, dec_w, dec_b)
    return out2d[:N, :V].reshape(B, S, V)


def make_params(key, hidden_size, vocab_size, dtype=jnp.float32):
    k1, k2, k3 = jax.random.split(key, 3)
    # PyTorch Linear stores (out, in); weights are kept pre-transposed (in, out).
    dense_w = jax.random.normal(k1, (hidden_size, hidden_size), dtype) * 0.02
    dense_b = jax.random.normal(k2, (1, hidden_size), dtype) * 0.02
    decoder_w = jax.random.normal(k3, (hidden_size, vocab_size), dtype) * 0.02
    decoder_b = jnp.zeros((1, vocab_size), dtype)   # nn.Parameter(torch.zeros(vocab))
    ln_g = jnp.ones((1, hidden_size), dtype)        # LayerNorm default init
    ln_b = jnp.zeros((1, hidden_size), dtype)
    return {
        "dense_w": dense_w, "dense_b": dense_b,
        "ln_g": ln_g, "ln_b": ln_b,
        "decoder_w": decoder_w, "decoder_b": decoder_b,
    }


def _reference(x, p, eps=1e-12):
    h = x @ p["dense_w"] + p["dense_b"]
    h = h * 0.5 * (1.0 + jax.lax.erf(h / jnp.sqrt(2.0)))
    mean = jnp.mean(h, axis=-1, keepdims=True)
    var = jnp.mean((h - mean) ** 2, axis=-1, keepdims=True)
    h = (h - mean) / jnp.sqrt(var + eps) * p["ln_g"] + p["ln_b"]
    return h @ p["decoder_w"] + p["decoder_b"]


if __name__ == "__main__":
    key = jax.random.PRNGKey(0)

    # --- Test 1: default bf16-MXU fast path (loose tolerance vs f32 ref) -----
    B, S, H, V = 2, 8, 32, 128
    kx, kp, key = jax.random.split(key, 3)
    x = jax.random.normal(kx, (B, S, H), jnp.float32)
    params = make_params(kp, H, V)

    out = bert_only_mlm_head(x, params)                 # bf16 matmuls, f32 acc
    out = jax.block_until_ready(out)
    ref = _reference(x, params)
    assert out.shape == (B, S, V)
    assert jnp.allclose(out, ref, atol=3e-2, rtol=3e-2)

    # --- Test 2: f32 matmul path; exercises row padding, multi-tile grid &
    #             scratch reuse (strict tolerance) -----------------------------
    B2, S2, H2, V2 = 2, 12, 64, 384   # N=24 -> padded to 32; grid = (2, 3)
    kx2, kp2, key = jax.random.split(key, 3)
    x2 = jax.random.normal(kx2, (B2, S2, H2), jnp.float32)
    params2 = make_params(kp2, H2, V2)

    out2 = bert_only_mlm_head(x2, params2, tm=16, tn=128,
                              matmul_dtype=jnp.float32)
    out2 = jax.block_until_ready(out2)
    ref2 = _reference(x2, params2)
    assert out2.shape == (B2, S2, V2)
    assert jnp.allclose(out2, ref2, atol=1e-4, rtol=1e-4)

    print("KERNEL_OK")
</pallas_src>

<mosaic_0001>
module attributes {stable_mosaic.version = 11 : i64} {
  func.func @_mlm_head_kernel(%arg0: i32, %arg1: i32, %arg2: memref<8x32xbf16, #tpu.memory_space<vmem>>, %arg3: memref<32x32xbf16, #tpu.memory_space<vmem>>, %arg4: memref<1x32xf32, #tpu.memory_space<vmem>>, %arg5: memref<1x32xf32, #tpu.memory_space<vmem>>, %arg6: memref<1x32xf32, #tpu.memory_space<vmem>>, %arg7: memref<32x128xbf16, #tpu.memory_space<vmem>>, %arg8: memref<1x128xf32, #tpu.memory_space<vmem>>, %arg9: memref<8x128xf32, #tpu.memory_space<vmem>>, %arg10: memref<8x32xbf16, #tpu.memory_space<vmem>>) attributes {dimension_semantics = [#tpu.dimension_semantics<parallel>, #tpu.dimension_semantics<arbitrary>], iteration_bounds = array<i64: 2, 1>, scalar_prefetch = 0 : i64, scratch_operands = 1 : i64, tpu.core_type = #tpu.core_type<tc>, window_params = [{transform_indices = @transform_0, window_bounds = array<i64: 8, 32>}, {pipeline_mode = #tpu.pipeline_mode<synchronous>, transform_indices = @transform_1, window_bounds = array<i64: 32, 32>}, {pipeline_mode = #tpu.pipeline_mode<synchronous>, transform_indices = @transform_2, window_bounds = array<i64: 1, 32>}, {pipeline_mode = #tpu.pipeline_mode<synchronous>, transform_indices = @transform_3, window_bounds = array<i64: 1, 32>}, {pipeline_mode = #tpu.pipeline_mode<synchronous>, transform_indices = @transform_4, window_bounds = array<i64: 1, 32>}, {transform_indices = @transform_5, window_bounds = array<i64: 32, 128>}, {transform_indices = @transform_6, window_bounds = array<i64: 1, 128>}, {transform_indices = @transform_7, window_bounds = array<i64: 8, 128>}]} {
    %c0_i32 = arith.constant 0 : i32
    %0 = arith.cmpi eq, %arg1, %c0_i32 : i32
    %1 = arith.extui %0 : i1 to i32
    %c0_i32_0 = arith.constant 0 : i32
    %2 = arith.cmpi ne, %1, %c0_i32_0 : i32
    scf.if %2 {
      %c0_8 = arith.constant 0 : index
      %c0_9 = arith.constant 0 : index
      %10 = vector.load %arg2[%c0_8, %c0_9] : memref<8x32xbf16, #tpu.memory_space<vmem>>, vector<8x32xbf16>
      %c0_10 = arith.constant 0 : index
      %c0_11 = arith.constant 0 : index
      %11 = vector.load %arg3[%c0_10, %c0_11] : memref<32x32xbf16, #tpu.memory_space<vmem>>, vector<32x32xbf16>
      %cst_12 = arith.constant dense<0.000000e+00> : vector<8x32xf32>
      %12 = tpu.matmul %10, %11, %cst_12 {dimension_numbers = #tpu.dot_dimension_numbers<[1], [0], [0], [1], [0, 0, 1, 1], [], []>} : vector<8x32xbf16>, vector<32x32xbf16>, vector<8x32xf32> -> vector<8x32xf32>
      %c0_13 = arith.constant 0 : index
      %c0_14 = arith.constant 0 : index
      %13 = vector.load %arg4[%c0_13, %c0_14] : memref<1x32xf32, #tpu.memory_space<vmem>>, vector<1x32xf32>
      %14 = vector.broadcast %13 : vector<1x32xf32> to vector<8x32xf32>
      %15 = arith.addf %12, %14 : vector<8x32xf32>
      %cst_15 = arith.constant 5.000000e-01 : f32
      %16 = vector.broadcast %cst_15 : f32 to vector<8x32xf32>
      %17 = arith.mulf %15, %16 : vector<8x32xf32>
      %cst_16 = arith.constant 0.707106769 : f32
      %18 = vector.broadcast %cst_16 : f32 to vector<8x32xf32>
      %19 = arith.mulf %15, %18 : vector<8x32xf32>
      %20 = math.erf %19 : vector<8x32xf32>
      %cst_17 = arith.constant 1.000000e+00 : f32
      %21 = vector.broadcast %cst_17 : f32 to vector<8x32xf32>
      %22 = arith.addf %21, %20 : vector<8x32xf32>
      %23 = arith.mulf %17, %22 : vector<8x32xf32>
      %cst_18 = arith.constant dense<0.000000e+00> : vector<8xf32>
      %24 = vector.multi_reduction <add>, %23, %cst_18 [1] : vector<8x32xf32> to vector<8xf32>
      %25 = vector.shape_cast %24 : vector<8xf32> to vector<8x1xf32>
      %cst_19 = arith.constant 3.125000e-02 : f32
      %26 = vector.broadcast %cst_19 : f32 to vector<8x1xf32>
      %27 = arith.mulf %25, %26 : vector<8x1xf32>
      %28 = arith.mulf %23, %23 : vector<8x32xf32>
      %cst_20 = arith.constant dense<0.000000e+00> : vector<8xf32>
      %29 = vector.multi_reduction <add>, %28, %cst_20 [1] : vector<8x32xf32> to vector<8xf32>
      %30 = vector.shape_cast %29 : vector<8xf32> to vector<8x1xf32>
      %cst_21 = arith.constant 3.125000e-02 : f32
      %31 = vector.broadcast %cst_21 : f32 to vector<8x1xf32>
      %32 = arith.mulf %30, %31 : vector<8x1xf32>
      %33 = arith.mulf %27, %27 : vector<8x1xf32>
      %34 = arith.subf %32, %33 : vector<8x1xf32>
      %cst_22 = arith.constant 0.000000e+00 : f32
      %35 = vector.broadcast %cst_22 : f32 to vector<8x1xf32>
      %36 = arith.maximumf %34, %35 : vector<8x1xf32>
      %cst_23 = arith.constant 9.99999996E-13 : f32
      %37 = vector.broadcast %cst_23 : f32 to vector<8x1xf32>
      %38 = arith.addf %36, %37 : vector<8x1xf32>
      %39 = math.rsqrt %38 : vector<8x1xf32>
      %40 = vector.broadcast %27 : vector<8x1xf32> to vector<8x32xf32>
      %41 = arith.subf %23, %40 : vector<8x32xf32>
      %42 = vector.broadcast %39 : vector<8x1xf32> to vector<8x32xf32>
      %43 = arith.mulf %41, %42 : vector<8x32xf32>
      %c0_24 = arith.constant 0 : index
      %c0_25 = arith.constant 0 : index
      %44 = vector.load %arg5[%c0_24, %c0_25] : memref<1x32xf32, #tpu.memory_space<vmem>>, vector<1x32xf32>
      %45 = vector.broadcast %44 : vector<1x32xf32> to vector<8x32xf32>
      %46 = arith.mulf %43, %45 : vector<8x32xf32>
      %c0_26 = arith.constant 0 : index
      %c0_27 = arith.constant 0 : index
      %47 = vector.load %arg6[%c0_26, %c0_27] : memref<1x32xf32, #tpu.memory_space<vmem>>, vector<1x32xf32>
      %48 = vector.broadcast %47 : vector<1x32xf32> to vector<8x32xf32>
      %49 = arith.addf %46, %48 : vector<8x32xf32>
      %50 = arith.truncf %49 : vector<8x32xf32> to vector<8x32xbf16>
      %c0_28 = arith.constant 0 : index
      %c0_29 = arith.constant 0 : index
      %51 = vector.load %arg10[%c0_28, %c0_29] : memref<8x32xbf16, #tpu.memory_space<vmem>>, vector<8x32xbf16>
      tpu.vector_store %arg10[%c0_28, %c0_29], %50 {strides = array<i32>} : memref<8x32xbf16, #tpu.memory_space<vmem>>, vector<8x32xbf16>,
    } else {
    }
    %c0 = arith.constant 0 : index
    %c0_1 = arith.constant 0 : index
    %3 = vector.load %arg10[%c0, %c0_1] : memref<8x32xbf16, #tpu.memory_space<vmem>>, vector<8x32xbf16>
    %c0_2 = arith.constant 0 : index
    %c0_3 = arith.constant 0 : index
    %4 = vector.load %arg7[%c0_2, %c0_3] : memref<32x128xbf16, #tpu.memory_space<vmem>>, vector<32x128xbf16>
    %cst = arith.constant dense<0.000000e+00> : vector<8x128xf32>
    %5 = tpu.matmul %3, %4, %cst {dimension_numbers = #tpu.dot_dimension_numbers<[1], [0], [0], [1], [0, 0, 1, 1], [], []>} : vector<8x32xbf16>, vector<32x128xbf16>, vector<8x128xf32> -> vector<8x128xf32>
    %c0_4 = arith.constant 0 : index
    %c0_5 = arith.constant 0 : index
    %6 = vector.load %arg8[%c0_4, %c0_5] : memref<1x128xf32, #tpu.memory_space<vmem>>, vector<1x128xf32>
    %7 = vector.broadcast %6 : vector<1x128xf32> to vector<8x128xf32>
    %8 = arith.addf %5, %7 : vector<8x128xf32>
    %c0_6 = arith.constant 0 : index
    %c0_7 = arith.constant 0 : index
    %9 = vector.load %arg9[%c0_6, %c0_7] : memref<8x128xf32, #tpu.memory_space<vmem>>, vector<8x128xf32>
    tpu.vector_store %arg9[%c0_6, %c0_7], %8 {strides = array<i32>} : memref<8x128xf32, #tpu.memory_space<vmem>>, vector<8x128xf32>,
    return
  }
  func.func @transform_0(%arg0: i32, %arg1: i32) -> (i32, i32) {
    %c0_i32 = arith.constant 0 : i32
    %c0_i32_0 = arith.constant 0 : i32
    return %arg0, %c0_i32 : i32, i32
  }
  func.func @transform_1(%arg0: i32, %arg1: i32) -> (i32, i32) {
    %c0_i32 = arith.constant 0 : i32
    %c0_i32_0 = arith.constant 0 : i32
    %c0_i32_1 = arith.constant 0 : i32
    return %c0_i32, %c0_i32_0 : i32, i32
  }
  func.func @transform_2(%arg0: i32, %arg1: i32) -> (i32, i32) {
    %c0_i32 = arith.constant 0 : i32
    %c0_i32_0 = arith.constant 0 : i32
    %c0_i32_1 = arith.constant 0 : i32
    return %c0_i32, %c0_i32_0 : i32, i32
  }
  func.func @transform_3(%arg0: i32, %arg1: i32) -> (i32, i32) {
    %c0_i32 = arith.constant 0 : i32
    %c0_i32_0 = arith.constant 0 : i32
    %c0_i32_1 = arith.constant 0 : i32
    return %c0_i32, %c0_i32_0 : i32, i32
  }
  func.func @transform_4(%arg0: i32, %arg1: i32) -> (i32, i32) {
    %c0_i32 = arith.constant 0 : i32
    %c0_i32_0 = arith.constant 0 : i32
    %c0_i32_1 = arith.constant 0 : i32
    return %c0_i32, %c0_i32_0 : i32, i32
  }
  func.func @transform_5(%arg0: i32, %arg1: i32) -> (i32, i32) {
    %c0_i32 = arith.constant 0 : i32
    %c0_i32_0 = arith.constant 0 : i32
    return %c0_i32, %arg1 : i32, i32
  }
  func.func @transform_6(%arg0: i32, %arg1: i32) -> (i32, i32) {
    %c0_i32 = arith.constant 0 : i32
    %c0_i32_0 = arith.constant 0 : i32
    return %c0_i32, %arg1 : i32, i32
  }
  func.func @transform_7(%arg0: i32, %arg1: i32) -> (i32, i32) {
    %c0_i32 = arith.constant 0 : i32
    return %arg0, %arg1 : i32, i32
  }
}

</mosaic_0001>

<llo_original>
// kernel: tpu_custom_call.1
$region0: #{tpu_custom_call.1}
  #allocation0 [shape = 'u32[]', space=smem, size = 0x4, offset = 0x4, fixed_abs, tag = 'smem constant byte address 0x4 - core index']
  #allocation1 [shape = 'u32[144,128]{1,0:T(1,128)}', space=vmem, size = 0x12000, scoped, tag = 'internal scratch']
  #allocation2 [shape = 'bf16[8,32]{1,0:T(8,128)(2,1)}', space=vmem, size = 0x800, scoped, tag = 'scratch operand']
  %s0 = inlined_call_operand.hbm [shape: bf16[16,32], index: 0, kind: input, shape index: {}]
  %s1 = inlined_call_operand.hbm [shape: bf16[32,32], index: 1, kind: input, shape index: {}]
  %s2 = inlined_call_operand.vmem [shape: f32[1,32], index: 2, kind: input, shape index: {}]
  %s3 = inlined_call_operand.vmem [shape: f32[1,32], index: 3, kind: input, shape index: {}]
  %s4 = inlined_call_operand.vmem [shape: f32[1,32], index: 4, kind: input, shape index: {}]
  %s5 = inlined_call_operand.hbm [shape: bf16[32,128], index: 5, kind: input, shape index: {}]
  %s6 = inlined_call_operand.vmem [shape: f32[1,128], index: 6, kind: input, shape index: {}]
  %s7 = inlined_call_operand.hbm [shape: f32[16,128], index: 7, kind: output, shape index: {}]
  %s8 = sld [smem:[#allocation0]]
  $region77: #{tpu_custom_call.1} parent=0
    _
  %s10 = ssub.s32 1, %s8
  %s11 = scalar_select 0, %s10, %s8
  $region1: #{tpu_custom_call.1} parent=0
    #allocation3 [shape = 'u8[4096]{0}', space=vmem, size = 0x1000, scoped, tag = 'input window, operand 0']
    #allocation4 [shape = 's32[2]{0}', space=sflag, size = 0x8, scoped, tag = 'scoped memory for tpu_custom_call.1']
    #allocation5 [shape = 's32[2]{0}', space=sflag, size = 0x8, scoped, tag = 'scoped memory for tpu_custom_call.1']
    #allocation6 [shape = 'u8[8192]{0}', space=vmem, size = 0x2000, scoped, tag = 'input window, operand 1, single buffered']
    #allocation7 [shape = 's32[1]{0}', space=sflag, size = 0x4, scoped, tag = 'scoped memory for tpu_custom_call.1']
    #allocation8 [shape = 'u8[8192]{0}', space=vmem, size = 0x2000, scoped, tag = 'input window, operand 5, single buffered']
    #allocation9 [shape = 'u8[8192]{0}', space=vmem, size = 0x2000, scoped, tag = 'output window, operand 0']
    %12 = vsyncpa [#allocation4], 0
    %s13 = scalar_lea.sflag [#allocation4], 1
    %14 = vsyncpa %s13, 0
    %15 = vsyncpa [#allocation7], 0
    %16 = vsyncpa [#allocation5], 0
    %s17 = scalar_lea.sflag [#allocation5], 1
    %18 = vsyncpa %s17, 0
    loop: start=0, step=1, limit=4
    $region2: #{tpu_custom_call.1} parent=1 // loop_pre_header
      _
    $region3: #{tpu_custom_call.1} parent=1 // loop_header
      %s20 = sphi 0, %s24
      %p21 = scmp.ge.s32.totalorder %s20, 4
      %s27 = sphi 0, %s39
      %s28 = sphi 0, %s35
      %s29 = sphi 0, %s27
      %s30 = sphi 0, %s28
      %s31 = sphi 0, %s29
      %s32 = sphi 0, %s30
      %s42 = sphi 0, %s44
      %s45 = sphi 0, %s42
      %s46 = sphi 0, %s45
      %s62 = sphi 0, %s46
      %s66 = sphi 0, %s66
      %s68 = sphi 0, %s66
      %s69 = sphi 0, %s68
      %s83 = sphi 0, %s69
      %s87 = sphi 0, %s87
      %s89 = sphi 0, %s87
      %s90 = sphi 0, %s89
      %s104 = sphi 0, %s90
      %s108 = sphi 0, %s108
      %s110 = sphi 0, %s108
      %s111 = sphi 0, %s110
      %s125 = sphi 0, %s111
      %s129 = sphi 0, %s129
      %s131 = sphi 0, %s129
      %s132 = sphi 0, %s131
      %s146 = sphi 0, %s132
      %s152 = sphi 0, %s154
      %s155 = sphi 0, %s152
      %s156 = sphi 0, %s155
      %s172 = sphi 0, %s156
      %s178 = sphi 0, %s180
      %s181 = sphi 0, %s178
      %s182 = sphi 0, %s181
      %s198 = sphi 0, %s182
      %s206 = sphi 0, %s208
      %s209 = sphi 0, %s206
      %s210 = sphi 0, %s209
      %s226 = sphi 0, %s210
    $region4: #{tpu_custom_call.1} parent=1 // loop_header_branch
      %23 = sbr.rel (%p21) target = $region8
    $region5: #{tpu_custom_call.1} parent=1 // loop_body
      %s25 = ssub.s32 %s20, 1
      %s26 = ssub.s32 %s20, 2
      %s33 = sadd.s32 1, %s28
      %p34 = scmp.ge.s32.totalorder %s33, 1
      %s35 = scalar_select %p34, 0, %s33
      %s36 = sadd.s32 1, %s27
      %s37 = scalar_select %p34, %s36, %s27
      %p38 = scmp.ge.s32.totalorder %s37, 2
      %s39 = scalar_select %p38, 0, %s37
      %s40 = ssub.s32 %s27, %s39
      %p41 = scmp.eq.s32.totalorder %s40, 0
      %s43 = sadd.s32 %s42, 1
      %s44 = scalar_select %p41, %s42, %s43
      %p47 = pneg %p41
      %p48 = scmp.eq.s32.totalorder %s20, 1
      %p49 = por %p47, %p48
      %p50 = scmp.ne.s32.totalorder %s42, %s45
      %p51 = scmp.eq.s32.totalorder %s20, 0
      %p52 = por %p50, %p51
      %p53 = scmp.ne.s32.totalorder %s42, %s45
      %p54 = scmp.eq.s32.totalorder %s25, 1
      %p55 = por %p53, %p54
      %p56 = scmp.ne.s32.totalorder %s45, %s46
      %p57 = scmp.eq.s32.totalorder %s25, 0
      %p58 = por %p56, %p57
      %p59 = scmp.ne.s32.totalorder %s45, %s46
      %p60 = scmp.eq.s32.totalorder %s26, 1
      %p61 = por %p59, %p60
      %p63 = scmp.ne.s32.totalorder %s46, %s62
      %p64 = scmp.eq.s32.totalorder %s26, 0
      %p65 = por %p63, %p64
      %s67 = sadd.s32 %s66, 1
      %p70 = scmp.eq.s32.totalorder %s20, 1
      %p71 = scmp.ne.s32.totalorder %s66, %s68
      %p72 = scmp.eq.s32.totalorder %s20, 0
      %p73 = por %p71, %p72
      %p74 = scmp.ne.s32.totalorder %s66, %s68
      %p75 = scmp.eq.s32.totalorder %s25, 1
      %p76 = por %p74, %p75
      %p77 = scmp.ne.s32.totalorder %s68, %s69
      %p78 = scmp.eq.s32.totalorder %s25, 0
      %p79 = por %p77, %p78
      %p80 = scmp.ne.s32.totalorder %s68, %s69
      %p81 = scmp.eq.s32.totalorder %s26, 1
      %p82 = por %p80, %p81
      %p84 = scmp.ne.s32.totalorder %s69, %s83
      %p85 = scmp.eq.s32.totalorder %s26, 0
      %p86 = por %p84, %p85
      %s88 = sadd.s32 %s87, 1
      %p91 = scmp.eq.s32.totalorder %s20, 1
      %p92 = scmp.ne.s32.totalorder %s87, %s89
      %p93 = scmp.eq.s32.totalorder %s20, 0
      %p94 = por %p92, %p93
      %p95 = scmp.ne.s32.totalorder %s87, %s89
      %p96 = scmp.eq.s32.totalorder %s25, 1
      %p97 = por %p95, %p96
      %p98 = scmp.ne.s32.totalorder %s89, %s90
      %p99 = scmp.eq.s32.totalorder %s25, 0
      %p100 = por %p98, %p99
      %p101 = scmp.ne.s32.totalorder %s89, %s90
      %p102 = scmp.eq.s32.totalorder %s26, 1
      %p103 = por %p101, %p102
      %p105 = scmp.ne.s32.totalorder %s90, %s104
      %p106 = scmp.eq.s32.totalorder %s26, 0
      %p107 = por %p105, %p106
      %s109 = sadd.s32 %s108, 1
      %p112 = scmp.eq.s32.totalorder %s20, 1
      %p113 = scmp.ne.s32.totalorder %s108, %s110
      %p114 = scmp.eq.s32.totalorder %s20, 0
      %p115 = por %p113, %p114
      %p116 = scmp.ne.s32.totalorder %s108, %s110
      %p117 = scmp.eq.s32.totalorder %s25, 1
      %p118 = por %p116, %p117
      %p119 = scmp.ne.s32.totalorder %s110, %s111
      %p120 = scmp.eq.s32.totalorder %s25, 0
      %p121 = por %p119, %p120
      %p122 = scmp.ne.s32.totalorder %s110, %s111
      %p123 = scmp.eq.s32.totalorder %s26, 1
      %p124 = por %p122, %p123
      %p126 = scmp.ne.s32.totalorder %s111, %s125
      %p127 = scmp.eq.s32.totalorder %s26, 0
      %p128 = por %p126, %p127
      %s130 = sadd.s32 %s129, 1
      %p133 = scmp.eq.s32.totalorder %s20, 1
      %p134 = scmp.ne.s32.totalorder %s129, %s131
      %p135 = scmp.eq.s32.totalorder %s20, 0
      %p136 = por %p134, %p135
      %p137 = scmp.ne.s32.totalorder %s129, %s131
      %p138 = scmp.eq.s32.totalorder %s25, 1
      %p139 = por %p137, %p138
      %p140 = scmp.ne.s32.totalorder %s131, %s132
      %p141 = scmp.eq.s32.totalorder %s25, 0
      %p142 = por %p140, %p141
      %p143 = scmp.ne.s32.totalorder %s131, %s132
      %p144 = scmp.eq.s32.totalorder %s26, 1
      %p145 = por %p143, %p144
      %p147 = scmp.ne.s32.totalorder %s132, %s146
      %p148 = scmp.eq.s32.totalorder %s26, 0
      %p149 = por %p147, %p148
      %s150 = ssub.s32 %s28, %s35
      %p151 = scmp.eq.s32.totalorder %s150, 0
      %s153 = sadd.s32 %s152, 1
      %s154 = scalar_select %p151, %s152, %s153
      %p157 = pneg %p151
      %p158 = scmp.eq.s32.totalorder %s20, 1
      %p159 = por %p157, %p158
      %p160 = scmp.ne.s32.totalorder %s152, %s155
      %p161 = scmp.eq.s32.totalorder %s20, 0
      %p162 = por %p160, %p161
      %p163 = scmp.ne.s32.totalorder %s152, %s155
      %p164 = scmp.eq.s32.totalorder %s25, 1
      %p165 = por %p163, %p164
      %p166 = scmp.ne.s32.totalorder %s155, %s156
      %p167 = scmp.eq.s32.totalorder %s25, 0
      %p168 = por %p166, %p167
      %p169 = scmp.ne.s32.totalorder %s155, %s156
      %p170 = scmp.eq.s32.totalorder %s26, 1
      %p171 = por %p169, %p170
      %p173 = scmp.ne.s32.totalorder %s156, %s172
      %p174 = scmp.eq.s32.totalorder %s26, 0
      %p175 = por %p173, %p174
      %s176 = ssub.s32 %s28, %s35
      %p177 = scmp.eq.s32.totalorder %s176, 0
      %s179 = sadd.s32 %s178, 1
      %s180 = scalar_select %p177, %s178, %s179
      %p183 = pneg %p177
      %p184 = scmp.eq.s32.totalorder %s20, 1
      %p185 = por %p183, %p184
      %p186 = scmp.ne.s32.totalorder %s178, %s181
      %p187 = scmp.eq.s32.totalorder %s20, 0
      %p188 = por %p186, %p187
      %p189 = scmp.ne.s32.totalorder %s178, %s181
      %p190 = scmp.eq.s32.totalorder %s25, 1
      %p191 = por %p189, %p190
      %p192 = scmp.ne.s32.totalorder %s181, %s182
      %p193 = scmp.eq.s32.totalorder %s25, 0
      %p194 = por %p192, %p193
      %p195 = scmp.ne.s32.totalorder %s181, %s182
      %p196 = scmp.eq.s32.totalorder %s26, 1
      %p197 = por %p195, %p196
      %p199 = scmp.ne.s32.totalorder %s182, %s198
      %p200 = scmp.eq.s32.totalorder %s26, 0
      %p201 = por %p199, %p200
      %s202 = ssub.s32 %s27, %s39
      %s203 = ssub.s32 %s28, %s35
      %s204 = sor.u32 %s202, %s203
      %p205 = scmp.eq.s32.totalorder %s204, 0
      %s207 = sadd.s32 %s206, 1
      %s208 = scalar_select %p205, %s206, %s207
      %p211 = pneg %p205
      %p212 = scmp.eq.s32.totalorder %s20, 1
      %p213 = por %p211, %p212
      %p214 = scmp.ne.s32.totalorder %s206, %s209
      %p215 = scmp.eq.s32.totalorder %s20, 0
      %p216 = por %p214, %p215
      %p217 = scmp.ne.s32.totalorder %s206, %s209
      %p218 = scmp.eq.s32.totalorder %s25, 1
      %p219 = por %p217, %p218
      %p220 = scmp.ne.s32.totalorder %s209, %s210
      %p221 = scmp.eq.s32.totalorder %s25, 0
      %p222 = por %p220, %p221
      %p223 = scmp.ne.s32.totalorder %s209, %s210
      %p224 = scmp.eq.s32.totalorder %s26, 1
      %p225 = por %p223, %p224
      %p227 = scmp.ne.s32.totalorder %s210, %s226
      %p228 = scmp.eq.s32.totalorder %s26, 0
      %p229 = por %p227, %p228
      %p230 = scmp.le.s32.totalorder 1, %s20
      %p231 = scmp.lt.s32.totalorder %s20, 3
      %p232 = pnand %p230, %p231
      %p233 = pneg %p232
      // Predicated region
      $region9: #{tpu_custom_call.1} parent=5 // pred_check
        _
      $region10: #{tpu_custom_call.1} parent=5 // pred_check_branch
        %235 = sbr.rel (%p232) target = $region12
      $region11: #{tpu_custom_call.1} parent=5 // pred_region
        %s236 = ssub.s32 %s20, 1
        // Predicated region
        $region13: #{tpu_custom_call.1} parent=11 // pred_check
          %p237 = pneg %p79
        $region14: #{tpu_custom_call.1} parent=11 // pred_check_branch
          %239 = sbr.rel (%p237) target = $region16
        $region15: #{tpu_custom_call.1} parent=11 // pred_region
          %s241 = ssub.s32 256, 256
          %242 = vsyncadd [#allocation7], %s241
          %s243 = sshll.u32 [#allocation6], 4
          %s244 = int_to_ptr.vmem [resolvable:$true] %s243
          %249 = dma.hbm_to_vmem [thread:$0]  %s1, 256, %s244, [#allocation7], 64, 64, 4
        $region16: #{tpu_custom_call.1} parent=11 // pred_fallthru
          _
        // Predicated region
        $region17: #{tpu_custom_call.1} parent=11 // pred_check
          %p250 = pneg %p100
        $region18: #{tpu_custom_call.1} parent=11 // pred_check_branch
          %252 = sbr.rel (%p250) target = $region20
        $region19: #{tpu_custom_call.1} parent=11 // pred_region
          _
        $region20: #{tpu_custom_call.1} parent=11 // pred_fallthru
          _
        // Predicated region
        $region21: #{tpu_custom_call.1} parent=11 // pred_check
          %p253 = pneg %p121
        $region22: #{tpu_custom_call.1} parent=11 // pred_check_branch
          %255 = sbr.rel (%p253) target = $region24
        $region23: #{tpu_custom_call.1} parent=11 // pred_region
          _
        $region24: #{tpu_custom_call.1} parent=11 // pred_fallthru
          _
        // Predicated region
        $region25: #{tpu_custom_call.1} parent=11 // pred_check
          %p256 = pneg %p142
        $region26: #{tpu_custom_call.1} parent=11 // pred_check_branch
          %258 = sbr.rel (%p256) target = $region28
        $region27: #{tpu_custom_call.1} parent=11 // pred_region
          _
        $region28: #{tpu_custom_call.1} parent=11 // pred_fallthru
          _
        // Predicated region
        $region29: #{tpu_custom_call.1} parent=11 // pred_check
          %p259 = pneg %p168
        $region30: #{tpu_custom_call.1} parent=11 // pred_check_branch
          %261 = sbr.rel (%p259) target = $region32
        $region31: #{tpu_custom_call.1} parent=11 // pred_region
          %s263 = ssub.s32 256, 256
          %264 = vsyncadd [#allocation7], %s263
          %s265 = smul.addr %s30, 64
          %s266 = scalar_lea.hbm %s5, %s265
          %s267 = sshll.u32 [#allocation8], 4
          %s268 = int_to_ptr.vmem [resolvable:$true] %s267
          %273 = dma.hbm_to_vmem [thread:$0]  %s266, 256, %s268, [#allocation7], 64, 64, 4
        $region32: #{tpu_custom_call.1} parent=11 // pred_fallthru
          _
        // Predicated region
        $region33: #{tpu_custom_call.1} parent=11 // pred_check
          %p274 = pneg %p194
        $region34: #{tpu_custom_call.1} parent=11 // pred_check_branch
          %276 = sbr.rel (%p274) target = $region36
        $region35: #{tpu_custom_call.1} parent=11 // pred_region
          %p277 = scmp.lt.s32.totalorder %s30, 0
          %s278 = scalar_select %p277, %s30, 0
          %s279 = scalar_lea.vmem %s6, %s278
        $region36: #{tpu_custom_call.1} parent=11 // pred_fallthru
          _
      $region12: #{tpu_custom_call.1} parent=5 // pred_fallthru
        _
      %p280 = scmp.lt.s32.totalorder %s20, 2
      // Predicated region
      $region37: #{tpu_custom_call.1} parent=5 // pred_check
        %p281 = pneg %p280
      $region38: #{tpu_custom_call.1} parent=5 // pred_check_branch
        %283 = sbr.rel (%p281) target = $region40
      $region39: #{tpu_custom_call.1} parent=5 // pred_region
        // Predicated region
        $region41: #{tpu_custom_call.1} parent=39 // pred_check
          %p284 = pneg %p52
        $region42: #{tpu_custom_call.1} parent=39 // pred_check_branch
          %286 = sbr.rel (%p284) target = $region44
        $region43: #{tpu_custom_call.1} parent=39 // pred_region
          %s287 = sand.u32 %s42, 1
          %s288 = scalar_lea.sflag [#allocation4], %s287
          %s289 = sand.u32 %s42, 1
          %s290 = smul.addr %s289, 4
          %s291 = scalar_lea.vmem [#allocation3], %s290
          %s293 = ssub.s32 64, 64
          %294 = vsyncadd %s288, %s293
          %s295 = smul.addr %s27, 64
          %s296 = scalar_lea.hbm %s0, %s295
          %s298 = sshll.u32 %s291, 4
          %s299 = int_to_ptr.vmem [resolvable:$true] %s298
          %301 = dma.hbm_to_vmem [thread:$0]  %s296, 64, %s299, %s288
        $region44: #{tpu_custom_call.1} parent=39 // pred_fallthru
          _
      $region40: #{tpu_custom_call.1} parent=5 // pred_fallthru
        _
      %p302 = scmp.le.s32.totalorder 1, %s20
      %p303 = scmp.lt.s32.totalorder %s20, 3
      %p304 = pnand %p302, %p303
      %p305 = pneg %p304
      // Predicated region
      $region45: #{tpu_custom_call.1} parent=5 // pred_check
        _
      $region46: #{tpu_custom_call.1} parent=5 // pred_check_branch
        %307 = sbr.rel (%p304) target = $region48
      $region47: #{tpu_custom_call.1} parent=5 // pred_region
        %s308 = ssub.s32 %s20, 1
        %s309 = sand.u32 %s45, 1
        %s310 = scalar_lea.sflag [#allocation4], %s309
        %s311 = sand.u32 %s45, 1
        %s312 = smul.addr %s311, 4
        %s313 = scalar_lea.vmem [#allocation3], %s312
        // Predicated region
        $region49: #{tpu_custom_call.1} parent=47 // pred_check
          %p314 = pneg %p58
        $region50: #{tpu_custom_call.1} parent=47 // pred_check_branch
          %316 = sbr.rel (%p314) target = $region52
        $region51: #{tpu_custom_call.1} parent=47 // pred_region
          %317 = dma.done %s310, 64
        $region52: #{tpu_custom_call.1} parent=47 // pred_fallthru
          _
        // Predicated region
        $region53: #{tpu_custom_call.1} parent=47 // pred_check
          %p318 = pneg %p79
        $region54: #{tpu_custom_call.1} parent=47 // pred_check_branch
          %320 = sbr.rel (%p318) target = $region56
        $region55: #{tpu_custom_call.1} parent=47 // pred_region
          %321 = dma.done [#allocation7], 256
        $region56: #{tpu_custom_call.1} parent=47 // pred_fallthru
          _
        // Predicated region
        $region57: #{tpu_custom_call.1} parent=47 // pred_check
          %p322 = pneg %p168
        $region58: #{tpu_custom_call.1} parent=47 // pred_check_branch
          %324 = sbr.rel (%p322) target = $region60
        $region59: #{tpu_custom_call.1} parent=47 // pred_region
          %325 = dma.done [#allocation7], 256
        $region60: #{tpu_custom_call.1} parent=47 // pred_fallthru
          _
        %s326 = sand.u32 %s45, 1
        %s327 = scalar_lea.sflag [#allocation4], %s326
        %s328 = sand.u32 %s45, 1
        %s329 = smul.addr %s328, 4
        %s330 = scalar_lea.vmem [#allocation3], %s329
        %p331 = pneg %p58
        %p332 = pneg %p55
        %p333 = pneg %p79
        %p334 = pneg %p76
        %p335 = pneg %p100
        %p336 = pneg %p97
        %p337 = pneg %p121
        %p338 = pneg %p118
        %p339 = pneg %p142
        %p340 = pneg %p139
        %p341 = pneg %p168
        %p342 = pneg %p165
        %p343 = scmp.lt.s32.totalorder %s30, 0
        %s344 = scalar_select %p343, %s30, 0
        %s345 = scalar_lea.vmem %s6, %s344
        %p346 = pneg %p194
        %p347 = pneg %p191
        %p348 = pneg %p222
        %p349 = pneg %p219
        %s350 = sand.u32 %s209, 1
        %s351 = scalar_lea.sflag [#allocation5], %s350
        %s352 = sand.u32 %s209, 1
        %s353 = smul.addr %s352, 8
        %s354 = scalar_lea.vmem [#allocation9], %s353
        %p355 = scmp.lt.s32.totalorder %s30, 0
        %s356 = scalar_select %p355, %s30, 0
        %s357 = scalar_lea.vmem %s6, %s356
        %p359 = scmp.eq.s32.totalorder %s30, 0
        // Predicated region
        $region61: #{tpu_custom_call.1} parent=47 // pred_check
          %p360 = pneg %p359
        $region62: #{tpu_custom_call.1} parent=47 // pred_check_branch
          %362 = sbr.rel (%p360) target = $region64
        $region63: #{tpu_custom_call.1} parent=47 // pred_region
          %v363 = vld [vmem:[%s313] sm:$0xf]
          %v364 = vld [vmem:[#allocation6] sm:$0xf]
          %v365 = vld [vmem:[#allocation6 + $0x4] sm:$0xf]
          %v366 = vld [vmem:[#allocation6 + $0x8] sm:$0xf]
          %v367 = vld [vmem:[#allocation6 + $0xc] sm:$0xf]
          %v368 = vld [vmem:[%s2] sm:$0x1]
          %v370 = vlaneseq
          %v371 = vshrl.u32 %v370, 7
          %v372 = vsub.s32 0, %v371
          %v373 = vrot.slane %v368, %v372
          %v379 = vunpack.c.l.b16 %v364
          %v380 = vunpack.c.l.b16 %v365
          %v381 = vunpack.c.l.b16 %v366
          %v382 = vunpack.c.l.b16 %v367
          %v383 = vpack.c.b16 %v380, %v379
          %v384 = vpack.c.b16 %v382, %v381
          %vm387 = vcmask 261120
          %v389 = vsel %vm387, %v363, 0
          %391 = vmatprep.subr.bf16.mxu0 0
          %392 = vmatpush1.bf16.msra.mxu0 0
          %393 = vmatprep.subr.bf16.mxu0 0
          %394 = vmatpush1.bf16.msra.mxu0 0
          %395 = vmatprep.subr.bf16.mxu0 0
          %396 = vmatpush1.bf16.msra.mxu0 0
          %397 = vmatprep.subr.bf16.mxu0 0
          %398 = vmatpush1.bf16.msra.mxu0 0
          %399 = vmatprep.subr.bf16.mxu0 0
          %400 = vmatpush1.bf16.msra.mxu0 0
          %401 = vmatprep.subr.bf16.mxu0 0
          %402 = vmatpush1.bf16.msra.mxu0 0
          %403 = vmatprep.subr.bf16.mxu0 0
          %404 = vmatpush1.bf16.msra.mxu0 %v384
          %405 = vmatprep.subr.bf16.mxu0 0
          %406 = vmatpush1.bf16.msra.mxu0 %v383
          %407 = vmatprep.subr.bf16.mxu0 0
          %408 = vmatpush2.bf16.msra.mxu0 0
          %409 = vmatprep.subr.bf16.mxu0 0
          %410 = vmatpush2.bf16.msra.mxu0 0
          %411 = vmatprep.subr.bf16.mxu0 0
          %412 = vmatpush2.bf16.msra.mxu0 0
          %413 = vmatprep.subr.bf16.mxu0 0
          %414 = vmatpush2.bf16.msra.mxu0 0
          %415 = vmatprep.subr.bf16.mxu0 0
          %416 = vmatpush2.bf16.msra.mxu0 0
          %417 = vmatprep.subr.bf16.mxu0 0
          %418 = vmatpush2.bf16.msra.mxu0 0
          %419 = vmatprep.subr.bf16.mxu0 0
          %420 = vmatpush2.bf16.msra.mxu0 0
          %421 = vmatprep.subr.bf16.mxu0 0
          %422 = vmatpush2.bf16.msra.mxu0 0
          %423 = vmatprep.mubr.bf16.mxu0 0
          %424 = vmatmul.mubr.bf16.gmra.mxu0 %v389
          %v425 = vpop.f32.mrf.mxu0
          %v426 = vadd.f32 %v373, %v425
          %v427 = vpop.f32.mrf.mxu0
          %v428 = vpop.f32.mrf.mxu0
          %v429 = vpop.f32.mrf.mxu0
          %430 = vdwg.mxu0
          %v431 = vmul.f32 %v426, 0.5
          %v432 = vmul.f32 %v426, 0.70710677
          %v433 = verf.f32.pop %v432
          %v434 = vadd.f32 %v433, 1.0
          %v435 = vmul.f32 %v431, %v434
          %v436 = vsel %vm387, %v435, 0.0
          %437 = vadd.xlane.f32.xlu0 %v436
          %v438 = vpop.xlane.xlu0 %437
          %v439 = vmul.f32 %v438, 0.03125
          %v440 = vmul.f32 %v435, %v435
          %v441 = vsel %vm387, %v440, 0.0
          %442 = vadd.xlane.f32.xlu0 %v441
          %v443 = vpop.xlane.xlu0 %442
          %v444 = vmul.f32 %v443, 0.03125
          %v445 = vmul.f32 %v439, %v439
          %v446 = vsub.f32 %v444, %v445
          %v447 = vmax.f32 %v446, 0.0
          %v448 = vadd.f32 %v447, 1e-12
          %v449 = vrsqrt.pop %v448
          %v450 = vsub.f32 %v435, %v439
          %v451 = vmul.f32 %v450, %v449
          %v452 = vld [vmem:[%s3] sm:$0x1]
          %v454 = vlaneseq
          %v455 = vshrl.u32 %v454, 7
          %v456 = vsub.s32 0, %v455
          %v457 = vrot.slane %v452, %v456
          %v459 = vmul.f32 %v451, %v457
          %v460 = vld [vmem:[%s4] sm:$0x1]
          %v462 = vlaneseq
          %v463 = vshrl.u32 %v462, 7
          %v464 = vsub.s32 0, %v463
          %v465 = vrot.slane %v460, %v464
          %v467 = vadd.f32 %v459, %v465
          %v468 = vpack.c.bf16 %v467, %v467
          %vm469 = vcmask 257024
          %470 = vst.msk [vmem:[#allocation2] sm:$0xf] %vm469, %v468
        $region64: #{tpu_custom_call.1} parent=47 // pred_fallthru
          _
        %v471 = vld [vmem:[#allocation2] sm:$0xf]
        %v472 = vld [vmem:[#allocation8] sm:$0xf]
        %v473 = vld [vmem:[#allocation8 + $0x4] sm:$0xf]
        %v474 = vld [vmem:[#allocation8 + $0x8] sm:$0xf]
        %v475 = vld [vmem:[#allocation8 + $0xc] sm:$0xf]
        %v476 = vld [vmem:[%s357] sm:$0x1]
        %v478 = vlaneseq
        %v479 = vshrl.u32 %v478, 7
        %v480 = vsub.s32 0, %v479
        %v481 = vrot.slane %v476, %v480
        %v487 = vunpack.c.l.b16 %v472
        %v488 = vunpack.c.l.b16 %v473
        %v489 = vunpack.c.l.b16 %v474
        %v490 = vunpack.c.l.b16 %v475
        %v491 = vpack.c.b16 %v488, %v487
        %v492 = vpack.c.b16 %v490, %v489
        %vm495 = vcmask 261120
        %v497 = vsel %vm495, %v471, 0
        %499 = vmatprep.subr.bf16.mxu0 0
        %500 = vmatpush1.bf16.msra.mxu0 0
        %501 = vmatprep.subr.bf16.mxu0 0
        %502 = vmatpush1.bf16.msra.mxu0 0
        %503 = vmatprep.subr.bf16.mxu0 0
        %504 = vmatpush1.bf16.msra.mxu0 0
        %505 = vmatprep.subr.bf16.mxu0 0
        %506 = vmatpush1.bf16.msra.mxu0 0
        %507 = vmatprep.subr.bf16.mxu0 0
        %508 = vmatpush1.bf16.msra.mxu0 0
        %509 = vmatprep.subr.bf16.mxu0 0
        %510 = vmatpush1.bf16.msra.mxu0 0
        %511 = vmatprep.subr.bf16.mxu0 0
        %512 = vmatpush1.bf16.msra.mxu0 %v492
        %513 = vmatprep.subr.bf16.mxu0 0
        %514 = vmatpush1.bf16.msra.mxu0 %v491
        %515 = vmatprep.subr.bf16.mxu0 0
        %516 = vmatpush2.bf16.msra.mxu0 0
        %517 = vmatprep.subr.bf16.mxu0 0
        %518 = vmatpush2.bf16.msra.mxu0 0
        %519 = vmatprep.subr.bf16.mxu0 0
        %520 = vmatpush2.bf16.msra.mxu0 0
        %521 = vmatprep.subr.bf16.mxu0 0
        %522 = vmatpush2.bf16.msra.mxu0 0
        %523 = vmatprep.subr.bf16.mxu0 0
        %524 = vmatpush2.bf16.msra.mxu0 0
        %525 = vmatprep.subr.bf16.mxu0 0
        %526 = vmatpush2.bf16.msra.mxu0 0
        %527 = vmatprep.subr.bf16.mxu0 0
        %528 = vmatpush2.bf16.msra.mxu0 0
        %529 = vmatprep.subr.bf16.mxu0 0
        %530 = vmatpush2.bf16.msra.mxu0 0
        %531 = vmatprep.mubr.bf16.mxu0 0
        %532 = vmatmul.mubr.bf16.gmra.mxu0 %v497
        %v533 = vpop.f32.mrf.mxu0
        %v534 = vadd.f32 %v481, %v533
        %v535 = vpop.f32.mrf.mxu0
        %v536 = vpop.f32.mrf.mxu0
        %v537 = vpop.f32.mrf.mxu0
        %538 = vdwg.mxu0
        %539 = vst [vmem:[%s354] sm:$0xff] %v534
        %s540 = sand.u32 %s209, 1
        %s541 = scalar_lea.sflag [#allocation5], %s540
        %s542 = sand.u32 %s209, 1
        %s543 = smul.addr %s542, 8
        %s544 = scalar_lea.vmem [#allocation9], %s543
        // Predicated region
        $region65: #{tpu_custom_call.1} parent=47 // pred_check
          %p545 = pneg %p219
        $region66: #{tpu_custom_call.1} parent=47 // pred_check_branch
          %547 = sbr.rel (%p545) target = $region68
        $region67: #{tpu_custom_call.1} parent=47 // pred_region
          %s549 = ssub.s32 128, 128
          %550 = vsyncadd %s541, %s549
          %s551 = sadd.s32 %s30, %s29
          %s552 = smul.addr %s551, 128
          %s553 = scalar_lea.hbm %s7, %s552
          %s555 = sshll.u32 %s544, 4
          %s556 = int_to_ptr.vmem [resolvable:$true] %s555
          %558 = dma.vmem_to_hbm [thread:$0]  %s556, 128, %s553, %s541
        $region68: #{tpu_custom_call.1} parent=47 // pred_fallthru
          _
      $region48: #{tpu_custom_call.1} parent=5 // pred_fallthru
        _
      %p559 = scmp.le.s32.totalorder 2, %s20
      // Predicated region
      $region69: #{tpu_custom_call.1} parent=5 // pred_check
        %p560 = pneg %p559
      $region70: #{tpu_custom_call.1} parent=5 // pred_check_branch
        %562 = sbr.rel (%p560) target = $region72
      $region71: #{tpu_custom_call.1} parent=5 // pred_region
        %s563 = ssub.s32 %s20, 2
        // Predicated region
        $region73: #{tpu_custom_call.1} parent=71 // pred_check
          %p564 = pneg %p225
        $region74: #{tpu_custom_call.1} parent=71 // pred_check_branch
          %566 = sbr.rel (%p564) target = $region76
        $region75: #{tpu_custom_call.1} parent=71 // pred_region
          %s567 = sand.u32 %s210, 1
          %s568 = scalar_lea.sflag [#allocation5], %s567
          %s569 = sand.u32 %s210, 1
          %s570 = smul.addr %s569, 8
          %s571 = scalar_lea.vmem [#allocation9], %s570
          %572 = dma.done %s568, 128
        $region76: #{tpu_custom_call.1} parent=71 // pred_fallthru
          _
      $region72: #{tpu_custom_call.1} parent=5 // pred_fallthru
        _
    $region6: #{tpu_custom_call.1} parent=1 // loop_footer
      %s24 = sadd.s32 1, %s20
    $region7: #{tpu_custom_call.1} parent=1 // loop_footer_branch
      %19 = sbr.rel target = $region3
    $region8: #{tpu_custom_call.1} parent=1 // loop_exit
      _
    %573 = vsyncpa [#allocation4], 1
    %s574 = scalar_lea.sflag [#allocation4], 1
    %575 = vsyncpa %s574, 1
    %576 = vsyncpa [#allocation7], 1
    %577 = vsyncpa [#allocation5], 1
    %s578 = scalar_lea.sflag [#allocation5], 1
    %579 = vsyncpa %s578, 1

</llo_original>
